<compile_context>
chip_gen: v7x
topology: tpu7x:2x2x1
jax: 0.10.0
libtpu: 0.0.40
codegen_flags: <defaults>
</compile_context>

<pallas_src>
import functools

import jax
import jax.numpy as jnp
from jax.experimental import pallas as pl
from jax.experimental.pallas import tpu as pltpu


# Packed parameter layout (flat f32[11]):
#   [ w1_00 w1_01 w1_02 w1_10 w1_11 w1_12  b1_0 b1_1  w2_00 w2_01  b2_0 ]
_W1_OFF, _B1_OFF, _W2_OFF, _B2_OFF = 0, 6, 8, 10

_LANE = 128
_TILE_QUANTUM = 1024  # lanes; guarantees (tb // 128) % 8 == 0 for every block


def mlp_kernel(params_ref, x_ref, o_ref):
    # params_ref: SMEM f32[11]                 -- packed weights + biases (scalars)
    # x_ref:      VMEM f32[3, tb//128, 128]    -- features x (batch-sublane, batch-lane)
    # o_ref:      VMEM f32[tb//128, 128]       -- dense (8,128)-aligned output tile

    # Hoist all scalar parameter reads / broadcasts to the top (JAX does not CSE
    # broadcast_in_dim, so don't re-read inside the expressions).
    w1_00 = params_ref[_W1_OFF + 0]
    w1_01 = params_ref[_W1_OFF + 1]
    w1_02 = params_ref[_W1_OFF + 2]
    w1_10 = params_ref[_W1_OFF + 3]
    w1_11 = params_ref[_W1_OFF + 4]
    w1_12 = params_ref[_W1_OFF + 5]
    b1_0 = params_ref[_B1_OFF + 0]
    b1_1 = params_ref[_B1_OFF + 1]
    w2_0 = params_ref[_W2_OFF + 0]
    w2_1 = params_ref[_W2_OFF + 1]
    b2_0 = params_ref[_B2_OFF]

    # Dense 2-D (tb//128, 128) tiles — full vregs, no sublane waste.
    x0 = x_ref[0]
    x1 = x_ref[1]
    x2 = x_ref[2]

    # Layer 1: Linear(3, 2) as 6 VPU FMAs + ReLU.
    h0 = jnp.maximum(w1_00 * x0 + w1_01 * x1 + w1_02 * x2 + b1_0, 0.0)
    h1 = jnp.maximum(w1_10 * x0 + w1_11 * x1 + w1_12 * x2 + b1_1, 0.0)

    # Layer 2: Linear(2, 1) as 2 VPU FMAs.
    o_ref[...] = (w2_0 * h0 + w2_1 * h1 + b2_0).astype(o_ref.dtype)


def _round_up(n, m):
    return ((n + m - 1) // m) * m


@functools.partial(jax.jit, static_argnames=("batch_tile",))
def mlp_forward(x, w1, b1, w2, b2, *, batch_tile=262144):
    """x: (B, 3); w1: (2, 3); b1: (1, 2); w2: (1, 2); b2: (1, 1)  ->  (B, 1).

    batch_tile: max lanes of batch per grid step (multiple of 1024). The default
    (256K lanes ~= 4 MiB/step, ~8 MiB double-buffered) fits v5e's 16 MiB scoped
    VMEM default as well as v6e/v7x budgets.
    """
    B, d_in = x.shape
    d_hid, _ = w1.shape
    d_out, _ = w2.shape
    assert (d_in, d_hid, d_out) == (3, 2, 1)

    # Adaptive tile: aim for >= 2 grid steps at large B (keeps v7x's second
    # TensorCore busy, bounds round-up padding waste), capped by batch_tile
    # (VMEM budget).  Tile is a multiple of 1024 so every block's sublane dim
    # (tb // 128) is a multiple of 8.
    tb_cap = max(_round_up(batch_tile, _TILE_QUANTUM), _TILE_QUANTUM)
    tb_adapt = _round_up(max(-(-B // 2), 1), _TILE_QUANTUM)
    tb = max(min(tb_cap, tb_adapt), _TILE_QUANTUM)
    Bp = _round_up(B, tb)
    nsub = tb // _LANE  # sublanes per block (multiple of 8)

    # Pack all 11 parameters into one flat f32 array -> single SMEM transfer.
    params = jnp.concatenate(
        [w1.reshape(-1), b1.reshape(-1), w2.reshape(-1), b2.reshape(-1)]
    ).astype(jnp.float32)

    # Single fused relayout: transpose + zero-pad + fold batch onto (sublane, lane).
    # Writes only 3 * Bp * 4 bytes (no 8-row padded slab).
    xt = jnp.pad(x.T.astype(jnp.float32), ((0, 0), (0, Bp - B)))
    xt = xt.reshape(d_in, Bp // _LANE, _LANE)

    # Double-buffered footprint: 2 * (input tile + output tile); keep >= the
    # smallest generation's scoped default so we never shrink the budget.
    vmem_bytes = max(2 * (d_in + 1) * tb * 4 + (1 << 20), 16 << 20)

    out = pl.pallas_call(
        mlp_kernel,
        out_shape=jax.ShapeDtypeStruct((Bp // _LANE, _LANE), jnp.float32),
        grid=(Bp // tb,),
        in_specs=[
            pl.BlockSpec(memory_space=pltpu.MemorySpace.SMEM),      # packed params
            pl.BlockSpec((d_in, nsub, _LANE), lambda i: (0, i, 0)),  # x tile
        ],
        out_specs=pl.BlockSpec((nsub, _LANE), lambda i: (i, 0)),
        compiler_params=pltpu.CompilerParams(
            dimension_semantics=("parallel",),
            vmem_limit_bytes=vmem_bytes,
        ),
    )(params, xt)

    # Unfold (Bp//128, 128) -> (Bp,), drop padding, back to PyTorch (B, 1).
    return out.reshape(Bp)[:B].reshape(B, d_out).astype(x.dtype)


def mlp_reference(x, w1, b1, w2, b2):
    h = jnp.maximum(x @ w1.T + b1, 0.0)
    return h @ w2.T + b2


if __name__ == "__main__":
    key = jax.random.PRNGKey(0)
    k_x, k_w1, k_b1, k_w2, k_b2 = jax.random.split(key, 5)

    B, D_IN, D_HID, D_OUT = 8, 3, 2, 1

    # Deterministic synthetic parameters (PyTorch nn.Linear shapes).
    x = jax.random.normal(k_x, (B, D_IN), dtype=jnp.float32)
    w1 = jax.random.normal(k_w1, (D_HID, D_IN), dtype=jnp.float32) * 0.5
    b1 = jax.random.normal(k_b1, (1, D_HID), dtype=jnp.float32) * 0.1
    w2 = jax.random.normal(k_w2, (D_OUT, D_HID), dtype=jnp.float32) * 0.5
    b2 = jax.random.normal(k_b2, (1, D_OUT), dtype=jnp.float32) * 0.1

    out = mlp_forward(x, w1, b1, w2, b2)
    out = jax.block_until_ready(out)

    ref = mlp_reference(x, w1, b1, w2, b2)
    assert out.shape == (B, D_OUT), out.shape
    assert jnp.allclose(out, ref, atol=1e-5, rtol=1e-5), (out, ref)

    print("KERNEL_OK")
</pallas_src>

<mosaic_0001>
module attributes {stable_mosaic.version = 11 : i64} {
  func.func @mlp_kernel(%arg0: i32, %arg1: memref<11xf32, #tpu.memory_space<smem>>, %arg2: memref<3x8x128xf32, #tpu.memory_space<vmem>>, %arg3: memref<8x128xf32, #tpu.memory_space<vmem>>) attributes {dimension_semantics = [#tpu.dimension_semantics<parallel>], iteration_bounds = array<i64: 1>, scalar_prefetch = 0 : i64, scratch_operands = 0 : i64, tpu.core_type = #tpu.core_type<tc>, window_params = [{transform_indices = @transform_0, window_bounds = array<i64: 11>}, {transform_indices = @transform_1, window_bounds = array<i64: 3, 8, 128>}, {transform_indices = @transform_2, window_bounds = array<i64: 8, 128>}]} {
    %c0 = arith.constant 0 : index
    %0 = memref.load %arg1[%c0] : memref<11xf32, #tpu.memory_space<smem>>
    %c1 = arith.constant 1 : index
    %1 = memref.load %arg1[%c1] : memref<11xf32, #tpu.memory_space<smem>>
    %c2 = arith.constant 2 : index
    %2 = memref.load %arg1[%c2] : memref<11xf32, #tpu.memory_space<smem>>
    %c3 = arith.constant 3 : index
    %3 = memref.load %arg1[%c3] : memref<11xf32, #tpu.memory_space<smem>>
    %c4 = arith.constant 4 : index
    %4 = memref.load %arg1[%c4] : memref<11xf32, #tpu.memory_space<smem>>
    %c5 = arith.constant 5 : index
    %5 = memref.load %arg1[%c5] : memref<11xf32, #tpu.memory_space<smem>>
    %c6 = arith.constant 6 : index
    %6 = memref.load %arg1[%c6] : memref<11xf32, #tpu.memory_space<smem>>
    %c7 = arith.constant 7 : index
    %7 = memref.load %arg1[%c7] : memref<11xf32, #tpu.memory_space<smem>>
    %c8 = arith.constant 8 : index
    %8 = memref.load %arg1[%c8] : memref<11xf32, #tpu.memory_space<smem>>
    %c9 = arith.constant 9 : index
    %9 = memref.load %arg1[%c9] : memref<11xf32, #tpu.memory_space<smem>>
    %c10 = arith.constant 10 : index
    %10 = memref.load %arg1[%c10] : memref<11xf32, #tpu.memory_space<smem>>
    %c0_0 = arith.constant 0 : index
    %c0_1 = arith.constant 0 : index
    %c0_2 = arith.constant 0 : index
    %11 = vector.load %arg2[%c0_0, %c0_1, %c0_2] : memref<3x8x128xf32, #tpu.memory_space<vmem>>, vector<1x8x128xf32>
    %12 = vector.shape_cast %11 : vector<1x8x128xf32> to vector<8x128xf32>
    %c1_3 = arith.constant 1 : index
    %c0_4 = arith.constant 0 : index
    %c0_5 = arith.constant 0 : index
    %13 = vector.load %arg2[%c1_3, %c0_4, %c0_5] : memref<3x8x128xf32, #tpu.memory_space<vmem>>, vector<1x8x128xf32>
    %14 = vector.shape_cast %13 : vector<1x8x128xf32> to vector<8x128xf32>
    %c2_6 = arith.constant 2 : index
    %c0_7 = arith.constant 0 : index
    %c0_8 = arith.constant 0 : index
    %15 = vector.load %arg2[%c2_6, %c0_7, %c0_8] : memref<3x8x128xf32, #tpu.memory_space<vmem>>, vector<1x8x128xf32>
    %16 = vector.shape_cast %15 : vector<1x8x128xf32> to vector<8x128xf32>
    %17 = vector.broadcast %0 : f32 to vector<8x128xf32>
    %18 = arith.mulf %17, %12 : vector<8x128xf32>
    %19 = vector.broadcast %1 : f32 to vector<8x128xf32>
    %20 = arith.mulf %19, %14 : vector<8x128xf32>
    %21 = arith.addf %18, %20 : vector<8x128xf32>
    %22 = vector.broadcast %2 : f32 to vector<8x128xf32>
    %23 = arith.mulf %22, %16 : vector<8x128xf32>
    %24 = arith.addf %21, %23 : vector<8x128xf32>
    %25 = vector.broadcast %6 : f32 to vector<8x128xf32>
    %26 = arith.addf %24, %25 : vector<8x128xf32>
    %cst = arith.constant 0.000000e+00 : f32
    %27 = vector.broadcast %cst : f32 to vector<8x128xf32>
    %28 = arith.maximumf %26, %27 : vector<8x128xf32>
    %29 = vector.broadcast %3 : f32 to vector<8x128xf32>
    %30 = arith.mulf %29, %12 : vector<8x128xf32>
    %31 = vector.broadcast %4 : f32 to vector<8x128xf32>
    %32 = arith.mulf %31, %14 : vector<8x128xf32>
    %33 = arith.addf %30, %32 : vector<8x128xf32>
    %34 = vector.broadcast %5 : f32 to vector<8x128xf32>
    %35 = arith.mulf %34, %16 : vector<8x128xf32>
    %36 = arith.addf %33, %35 : vector<8x128xf32>
    %37 = vector.broadcast %7 : f32 to vector<8x128xf32>
    %38 = arith.addf %36, %37 : vector<8x128xf32>
    %cst_9 = arith.constant 0.000000e+00 : f32
    %39 = vector.broadcast %cst_9 : f32 to vector<8x128xf32>
    %40 = arith.maximumf %38, %39 : vector<8x128xf32>
    %41 = vector.broadcast %8 : f32 to vector<8x128xf32>
    %42 = arith.mulf %41, %28 : vector<8x128xf32>
    %43 = vector.broadcast %9 : f32 to vector<8x128xf32>
    %44 = arith.mulf %43, %40 : vector<8x128xf32>
    %45 = arith.addf %42, %44 : vector<8x128xf32>
    %46 = vector.broadcast %10 : f32 to vector<8x128xf32>
    %47 = arith.addf %45, %46 : vector<8x128xf32>
    %c0_10 = arith.constant 0 : index
    %c0_11 = arith.constant 0 : index
    %48 = vector.load %arg3[%c0_10, %c0_11] : memref<8x128xf32, #tpu.memory_space<vmem>>, vector<8x128xf32>
    tpu.vector_store %arg3[%c0_10, %c0_11], %47 {strides = array<i32>} : memref<8x128xf32, #tpu.memory_space<vmem>>, vector<8x128xf32>,
    return
  }
  func.func @transform_0(%arg0: i32) -> i32 {
    %c0_i32 = arith.constant 0 : i32
    %c0_i32_0 = arith.constant 0 : i32
    return %c0_i32 : i32
  }
  func.func @transform_1(%arg0: i32) -> (i32, i32, i32) {
    %c0_i32 = arith.constant 0 : i32
    %c0_i32_0 = arith.constant 0 : i32
    %c0_i32_1 = arith.constant 0 : i32
    return %c0_i32, %arg0, %c0_i32_0 : i32, i32, i32
  }
  func.func @transform_2(%arg0: i32) -> (i32, i32) {
    %c0_i32 = arith.constant 0 : i32
    %c0_i32_0 = arith.constant 0 : i32
    return %arg0, %c0_i32 : i32, i32
  }
}

</mosaic_0001>

<llo_original>
// kernel: mlp_forward.1
$region0: #{mlp_forward.1}
  #allocation0 [shape = 'u32[]', space=smem, size = 0x4, offset = 0x4, fixed_abs, tag = 'smem constant byte address 0x4 - core index']
  #allocation1 [shape = 'u32[144,128]{1,0:T(1,128)}', space=vmem, size = 0x12000, scoped, tag = 'internal scratch']
  %s0 = inlined_call_operand.vmem [shape: f32[11], index: 0, kind: input, shape index: {}]
  %s1 = inlined_call_operand.vmem [shape: f32[3,8,128], index: 1, kind: input, shape index: {}]
  %s2 = inlined_call_operand.vmem [shape: f32[8,128], index: 2, kind: output, shape index: {}]
  %s3 = sld [smem:[#allocation0]]
  $region22: #{mlp_forward.1} parent=0
    _
  %s5 = ssub.s32 1, %s3
  %s6 = scalar_select 0, %s5, %s3
  $region1: #{mlp_forward.1} parent=0
    #allocation2 [shape = 'u8[512]{0}', space=smem, size = 0x200, scoped, tag = 'input window, operand 0, single buffered']
    #allocation3 [shape = 's32[1]{0}', space=sflag, size = 0x4, scoped, tag = 'scoped memory for mlp_forward.1']
    %7 = vsyncpa [#allocation3], 0
    // Predicated region
    $region2: #{mlp_forward.1} parent=1 // pred_check
      _
    $region3: #{mlp_forward.1} parent=1 // pred_check_branch
      %9 = sbr.rel (0) target = $region5
    $region4: #{mlp_forward.1} parent=1 // pred_region
      %s11 = ssub.s32 16, 16
      %12 = vsyncadd [#allocation3], %s11
      %s14 = sshll.u32 %s0, 4
      %s15 = int_to_ptr.vmem [resolvable:$true] %s14
      %17 = dma.vmem_to_smem %s15, 16, [#allocation2], [#allocation3]
    $region5: #{mlp_forward.1} parent=1 // pred_fallthru
      _
    // Predicated region
    $region6: #{mlp_forward.1} parent=1 // pred_check
      _
    $region7: #{mlp_forward.1} parent=1 // pred_check_branch
      %19 = sbr.rel (0) target = $region9
    $region8: #{mlp_forward.1} parent=1 // pred_region
      _
    $region9: #{mlp_forward.1} parent=1 // pred_fallthru
      _
    // Predicated region
    $region10: #{mlp_forward.1} parent=1 // pred_check
      _
    $region11: #{mlp_forward.1} parent=1 // pred_check_branch
      %21 = sbr.rel (0) target = $region13
    $region12: #{mlp_forward.1} parent=1 // pred_region
      %22 = dma.done [#allocation3], 16
    $region13: #{mlp_forward.1} parent=1 // pred_fallthru
      _
    %23 = sfence
    %s24 = sld [smem:[#allocation2]]
    %s25 = sld [smem:[#allocation2 + $0x1]]
    %s26 = sld [smem:[#allocation2 + $0x2]]
    %s27 = sld [smem:[#allocation2 + $0x3]]
    %s28 = sld [smem:[#allocation2 + $0x4]]
    %s29 = sld [smem:[#allocation2 + $0x5]]
    %s30 = sld [smem:[#allocation2 + $0x6]]
    %s31 = sld [smem:[#allocation2 + $0x7]]
    %s32 = sld [smem:[#allocation2 + $0x8]]
    %s33 = sld [smem:[#allocation2 + $0x9]]
    %s34 = sld [smem:[#allocation2 + $0xa]]
    %v35 = vld [vmem:[%s1] sm:$0xff]
    %s36 = scalar_lea.vmem %s1, 8
    %v37 = vld [vmem:[%s36] sm:$0xff]
    %s38 = scalar_lea.vmem %s1, 16
    %v39 = vld [vmem:[%s38] sm:$0xff]
    %v40 = vstv %s24
    %v41 = vmul.f32 %v40, %v35
    %v42 = vstv %s25
    %v43 = vmul.f32 %v42, %v37
    %v44 = vadd.f32 %v41, %v43
    %v45 = vstv %s26
    %v46 = vmul.f32 %v45, %v39
    %v47 = vadd.f32 %v44, %v46
    %v48 = vstv %s30
    %v49 = vadd.f32 %v47, %v48
    %v50 = vmax.f32 %v49, 0.0
    %v51 = vstv %s27
    %v52 = vmul.f32 %v51, %v35
    %v53 = vstv %s28
    %v54 = vmul.f32 %v53, %v37
    %v55 = vadd.f32 %v52, %v54
    %v56 = vstv %s29
    %v57 = vmul.f32 %v56, %v39
    %v58 = vadd.f32 %v55, %v57
    %v59 = vstv %s31
    %v60 = vadd.f32 %v58, %v59
    %v61 = vmax.f32 %v60, 0.0
    %v62 = vstv %s32
    %v63 = vmul.f32 %v62, %v50
    %v64 = vstv %s33
    %v65 = vmul.f32 %v64, %v61
    %v66 = vadd.f32 %v63, %v65
    %v67 = vstv %s34
    %v68 = vadd.f32 %v66, %v67
    %69 = vst [vmem:[%s2] sm:$0xff] %v68
    // Predicated region
    $region14: #{mlp_forward.1} parent=1 // pred_check
      _
    $region15: #{mlp_forward.1} parent=1 // pred_check_branch
      %71 = sbr.rel (0) target = $region17
    $region16: #{mlp_forward.1} parent=1 // pred_region
      _
    $region17: #{mlp_forward.1} parent=1 // pred_fallthru
      _
    // Predicated region
    $region18: #{mlp_forward.1} parent=1 // pred_check
      _
    $region19: #{mlp_forward.1} parent=1 // pred_check_branch
      %73 = sbr.rel (0) target = $region21
    $region20: #{mlp_forward.1} parent=1 // pred_region
      _
    $region21: #{mlp_forward.1} parent=1 // pred_fallthru
      _
    %74 = vsyncpa [#allocation3], 1

</llo_original>
